<compile_context>
chip_gen: v7x
topology: tpu7x:2x2x1
jax: 0.10.0
libtpu: 0.0.40
codegen_flags: <defaults>
</compile_context>

<pallas_src>
import jax
import jax.numpy as jnp
from jax.experimental import pallas as pl
from jax.experimental.pallas import tpu as pltpu

HIDDEN = 200        # nn.Linear(1, 200)
HIDDEN_PAD = 256    # pad to a multiple of 128 lanes -> unmasked VPU/XLU ops


def odefunc_kernel(y_ref, w1_ref, b1_ref, w2t_ref, b2_ref, o_ref):
    # y: (TB, 1), w1/b1/w2t: (1, HIDDEN_PAD), b2: (1,) in SMEM, out: (TB, 1)
    y = y_ref[...]                                   # (TB, 1)
    # Layer 1 as an outer product on the VPU (broadcast multiply), no MXU.
    h = y * w1_ref[...] + b1_ref[...]                # (TB, HIDDEN_PAD)
    h = jnp.maximum(h, 0.0)                          # ReLU
    # Layer 2: elementwise mul with transposed weights + lane reduction (XLU).
    out = jnp.sum(h * w2t_ref[...], axis=-1, keepdims=True)   # (TB, 1)
    o_ref[...] = (out + b2_ref[0]).astype(o_ref.dtype)


def odefunc_forward(t, y, params, *, tile_b=512):
    """Forward pass of ODEFunc. `t` is unused (matches the PyTorch module)."""
    del t
    w1p, b1p, w2t, b2 = params
    B = y.shape[0]
    dtype = y.dtype

    if B <= tile_b:
        tb, bp = B, B                      # single block: full batch
    else:
        tb = tile_b                        # multiple of 8 (sublane aligned)
        bp = pl.cdiv(B, tb) * tb
        if bp != B:
            y = jnp.pad(y, ((0, bp - B), (0, 0)))

    out = pl.pallas_call(
        odefunc_kernel,
        out_shape=jax.ShapeDtypeStruct((bp, 1), dtype),
        grid=(bp // tb,),
        in_specs=[
            pl.BlockSpec((tb, 1), lambda i: (i, 0)),              # y: tiled over batch
            pl.BlockSpec((1, HIDDEN_PAD), lambda i: (0, 0)),      # w1 row (resident)
            pl.BlockSpec((1, HIDDEN_PAD), lambda i: (0, 0)),      # b1 row (resident)
            pl.BlockSpec((1, HIDDEN_PAD), lambda i: (0, 0)),      # w2^T row (resident)
            pl.BlockSpec(memory_space=pltpu.MemorySpace.SMEM),    # b2 scalar in SMEM
        ],
        out_specs=pl.BlockSpec((tb, 1), lambda i: (i, 0)),
        compiler_params=pltpu.CompilerParams(
            dimension_semantics=("parallel",)),
    )(y, w1p, b1p, w2t, b2)
    return out[:B]


def init_params(key):
    """Matches the PyTorch init: weights ~ N(0, 0.1), biases = 0.

    Returns (kernel_params, raw_params):
      kernel_params: hidden padded to HIDDEN_PAD, w2 stored transposed (1, HIDDEN_PAD),
                     b2 as a length-1 SMEM scalar. Zero padding is numerically inert.
      raw_params:    unpadded (w1, b1, w2, b2) in (in, out) layout, for reference math.
    """
    k1, k2 = jax.random.split(key)
    w1 = jax.random.normal(k1, (1, HIDDEN), jnp.float32) * 0.1    # (in=1, out=200)
    b1 = jnp.zeros((1, HIDDEN), jnp.float32)
    w2 = jax.random.normal(k2, (HIDDEN, 1), jnp.float32) * 0.1    # (in=200, out=1)
    b2 = jnp.zeros((1, 1), jnp.float32)

    pad = HIDDEN_PAD - HIDDEN
    w1p = jnp.pad(w1, ((0, 0), (0, pad)))                # (1, 256)
    b1p = jnp.pad(b1, ((0, 0), (0, pad)))                # (1, 256)
    w2t = jnp.pad(w2.T, ((0, 0), (0, pad)))              # (1, 256), transposed
    b2s = b2.reshape((1,))                               # (1,) scalar for SMEM

    return (w1p, b1p, w2t, b2s), (w1, b1, w2, b2)


if __name__ == "__main__":
    key = jax.random.PRNGKey(0)
    pkey, ykey = jax.random.split(key)
    kernel_params, (w1, b1, w2, b2) = init_params(pkey)

    B = 8
    y = jax.random.normal(ykey, (B, 1), jnp.float32)
    t = jnp.zeros((), jnp.float32)   # unused by forward; kept for signature parity

    out = jax.block_until_ready(odefunc_forward(t, y, kernel_params))

    # Pure-JAX reference (unpadded weights).
    ref = jnp.maximum(y @ w1 + b1, 0.0) @ w2 + b2
    assert out.shape == (B, 1)
    assert jnp.allclose(out, ref, atol=1e-5, rtol=1e-5), (out, ref)

    print("KERNEL_OK")
</pallas_src>

<mosaic_0001>
module attributes {stable_mosaic.version = 11 : i64} {
  func.func @odefunc_kernel(%arg0: i32, %arg1: memref<8x1xf32, #tpu.memory_space<vmem>>, %arg2: memref<1x256xf32, #tpu.memory_space<vmem>>, %arg3: memref<1x256xf32, #tpu.memory_space<vmem>>, %arg4: memref<1x256xf32, #tpu.memory_space<vmem>>, %arg5: memref<1xf32, #tpu.memory_space<smem>>, %arg6: memref<8x1xf32, #tpu.memory_space<vmem>>) attributes {dimension_semantics = [#tpu.dimension_semantics<parallel>], iteration_bounds = array<i64: 1>, scalar_prefetch = 0 : i64, scratch_operands = 0 : i64, tpu.core_type = #tpu.core_type<tc>, window_params = [{transform_indices = @transform_0, window_bounds = array<i64: 8, 1>}, {pipeline_mode = #tpu.pipeline_mode<synchronous>, transform_indices = @transform_1, window_bounds = array<i64: 1, 256>}, {pipeline_mode = #tpu.pipeline_mode<synchronous>, transform_indices = @transform_2, window_bounds = array<i64: 1, 256>}, {pipeline_mode = #tpu.pipeline_mode<synchronous>, transform_indices = @transform_3, window_bounds = array<i64: 1, 256>}, {transform_indices = @transform_4, window_bounds = array<i64: 1>}, {transform_indices = @transform_5, window_bounds = array<i64: 8, 1>}]} {
    %c0 = arith.constant 0 : index
    %c0_0 = arith.constant 0 : index
    %0 = vector.load %arg1[%c0, %c0_0] : memref<8x1xf32, #tpu.memory_space<vmem>>, vector<8x1xf32>
    %c0_1 = arith.constant 0 : index
    %c0_2 = arith.constant 0 : index
    %1 = vector.load %arg2[%c0_1, %c0_2] : memref<1x256xf32, #tpu.memory_space<vmem>>, vector<1x256xf32>
    %2 = vector.broadcast %0 : vector<8x1xf32> to vector<8x256xf32>
    %3 = vector.broadcast %1 : vector<1x256xf32> to vector<8x256xf32>
    %4 = arith.mulf %2, %3 : vector<8x256xf32>
    %c0_3 = arith.constant 0 : index
    %c0_4 = arith.constant 0 : index
    %5 = vector.load %arg3[%c0_3, %c0_4] : memref<1x256xf32, #tpu.memory_space<vmem>>, vector<1x256xf32>
    %6 = vector.broadcast %5 : vector<1x256xf32> to vector<8x256xf32>
    %7 = arith.addf %4, %6 : vector<8x256xf32>
    %cst = arith.constant 0.000000e+00 : f32
    %8 = vector.broadcast %cst : f32 to vector<8x256xf32>
    %9 = arith.maximumf %7, %8 : vector<8x256xf32>
    %c0_5 = arith.constant 0 : index
    %c0_6 = arith.constant 0 : index
    %10 = vector.load %arg4[%c0_5, %c0_6] : memref<1x256xf32, #tpu.memory_space<vmem>>, vector<1x256xf32>
    %11 = vector.broadcast %10 : vector<1x256xf32> to vector<8x256xf32>
    %12 = arith.mulf %9, %11 : vector<8x256xf32>
    %cst_7 = arith.constant dense<0.000000e+00> : vector<8xf32>
    %13 = vector.multi_reduction <add>, %12, %cst_7 [1] : vector<8x256xf32> to vector<8xf32>
    %14 = vector.shape_cast %13 : vector<8xf32> to vector<8x1xf32>
    %c0_8 = arith.constant 0 : index
    %15 = memref.load %arg5[%c0_8] : memref<1xf32, #tpu.memory_space<smem>>
    %16 = vector.broadcast %15 : f32 to vector<8x1xf32>
    %17 = arith.addf %14, %16 : vector<8x1xf32>
    %c0_9 = arith.constant 0 : index
    %c0_10 = arith.constant 0 : index
    %18 = vector.load %arg6[%c0_9, %c0_10] : memref<8x1xf32, #tpu.memory_space<vmem>>, vector<8x1xf32>
    tpu.vector_store %arg6[%c0_9, %c0_10], %17 {strides = array<i32>} : memref<8x1xf32, #tpu.memory_space<vmem>>, vector<8x1xf32>,
    return
  }
  func.func @transform_0(%arg0: i32) -> (i32, i32) {
    %c0_i32 = arith.constant 0 : i32
    %c0_i32_0 = arith.constant 0 : i32
    return %arg0, %c0_i32 : i32, i32
  }
  func.func @transform_1(%arg0: i32) -> (i32, i32) {
    %c0_i32 = arith.constant 0 : i32
    %c0_i32_0 = arith.constant 0 : i32
    %c0_i32_1 = arith.constant 0 : i32
    return %c0_i32, %c0_i32_0 : i32, i32
  }
  func.func @transform_2(%arg0: i32) -> (i32, i32) {
    %c0_i32 = arith.constant 0 : i32
    %c0_i32_0 = arith.constant 0 : i32
    %c0_i32_1 = arith.constant 0 : i32
    return %c0_i32, %c0_i32_0 : i32, i32
  }
  func.func @transform_3(%arg0: i32) -> (i32, i32) {
    %c0_i32 = arith.constant 0 : i32
    %c0_i32_0 = arith.constant 0 : i32
    %c0_i32_1 = arith.constant 0 : i32
    return %c0_i32, %c0_i32_0 : i32, i32
  }
  func.func @transform_4(%arg0: i32) -> i32 {
    %c0_i32 = arith.constant 0 : i32
    %c0_i32_0 = arith.constant 0 : i32
    return %c0_i32 : i32
  }
  func.func @transform_5(%arg0: i32) -> (i32, i32) {
    %c0_i32 = arith.constant 0 : i32
    %c0_i32_0 = arith.constant 0 : i32
    return %arg0, %c0_i32 : i32, i32
  }
}

</mosaic_0001>

<llo_original>
// kernel: tpu_custom_call.1
$region0: #{tpu_custom_call.1}
  #allocation0 [shape = 'u32[]', space=smem, size = 0x4, offset = 0x4, fixed_abs, tag = 'smem constant byte address 0x4 - core index']
  #allocation1 [shape = 'u32[144,128]{1,0:T(1,128)}', space=vmem, size = 0x12000, scoped, tag = 'internal scratch']
  #allocation2 [shape = 'f32[1]{0:T(128)S(6)}', space=smem, size = 0x200, scoped, tag = 'scoped memory for tpu_custom_call.1']
  %s0 = inlined_call_operand.vmem [shape: f32[8,1], index: 0, kind: input, shape index: {}]
  %s1 = inlined_call_operand.vmem [shape: f32[1,256], index: 1, kind: input, shape index: {}]
  %s2 = inlined_call_operand.vmem [shape: f32[1,256], index: 2, kind: input, shape index: {}]
  %s3 = inlined_call_operand.vmem [shape: f32[1,256], index: 3, kind: input, shape index: {}]
  %s4 = inlined_call_operand.<no memory space> [shape: f32[1], index: 4, kind: input, shape index: {}]
  %s5 = inlined_call_operand.vmem [shape: f32[8,1], index: 5, kind: output, shape index: {}]
  %s6 = sld [smem:[#allocation0]]
  $region30: #{tpu_custom_call.1} parent=0
    _
  %s8 = ssub.s32 1, %s6
  %s9 = scalar_select 0, %s8, %s6
  %10 = sst [smem:[#allocation2]] %s4
  // Predicated region
  $region2: #{tpu_custom_call.1} parent=0 // pred_check
    _
  $region3: #{tpu_custom_call.1} parent=0 // pred_check_branch
    %12 = sbr.rel (0) target = $region5
  $region4: #{tpu_custom_call.1} parent=0 // pred_region
    _
  $region5: #{tpu_custom_call.1} parent=0 // pred_fallthru
    _
  // Predicated region
  $region6: #{tpu_custom_call.1} parent=0 // pred_check
    _
  $region7: #{tpu_custom_call.1} parent=0 // pred_check_branch
    %14 = sbr.rel (0) target = $region9
  $region8: #{tpu_custom_call.1} parent=0 // pred_region
    _
  $region9: #{tpu_custom_call.1} parent=0 // pred_fallthru
    _
  // Predicated region
  $region10: #{tpu_custom_call.1} parent=0 // pred_check
    _
  $region11: #{tpu_custom_call.1} parent=0 // pred_check_branch
    %16 = sbr.rel (0) target = $region13
  $region12: #{tpu_custom_call.1} parent=0 // pred_region
    _
  $region13: #{tpu_custom_call.1} parent=0 // pred_fallthru
    _
  // Predicated region
  $region14: #{tpu_custom_call.1} parent=0 // pred_check
    _
  $region15: #{tpu_custom_call.1} parent=0 // pred_check_branch
    %18 = sbr.rel (0) target = $region17
  $region16: #{tpu_custom_call.1} parent=0 // pred_region
    _
  $region17: #{tpu_custom_call.1} parent=0 // pred_fallthru
    _
  // Predicated region
  $region18: #{tpu_custom_call.1} parent=0 // pred_check
    _
  $region19: #{tpu_custom_call.1} parent=0 // pred_check_branch
    %20 = sbr.rel (0) target = $region21
  $region20: #{tpu_custom_call.1} parent=0 // pred_region
    _
  $region21: #{tpu_custom_call.1} parent=0 // pred_fallthru
    _
  %v21 = vld [vmem:[%s0] sm:$0xff]
  %v22 = vld [vmem:[%s1] sm:$0x3]
  %24 = vset.pattern.permute.xlu0 0
  %25 = vperm.xlu0 %24, %v21
  %v26 = vpop.permute.xlu0 %25
  %v29 = vlaneseq
  %v30 = vshrl.u32 %v29, 7
  %v31 = vsub.s32 0, %v30
  %v32 = vrot.slane %v22, %v31
  %v33 = vlaneseq
  %v34 = vshrl.u32 %v33, 7
  %v35 = vsub.s32 1, %v34
  %v36 = vrot.slane %v22, %v35
  %v39 = vmul.f32 %v26, %v32
  %v40 = vmul.f32 %v26, %v36
  %v41 = vld [vmem:[%s2] sm:$0x3]
  %v43 = vlaneseq
  %v44 = vshrl.u32 %v43, 7
  %v45 = vsub.s32 0, %v44
  %v46 = vrot.slane %v41, %v45
  %v47 = vlaneseq
  %v48 = vshrl.u32 %v47, 7
  %v49 = vsub.s32 1, %v48
  %v50 = vrot.slane %v41, %v49
  %v53 = vadd.f32 %v39, %v46
  %v54 = vadd.f32 %v40, %v50
  %v55 = vmax.f32 %v53, 0.0
  %v56 = vmax.f32 %v54, 0.0
  %v57 = vld [vmem:[%s3] sm:$0x3]
  %v59 = vlaneseq
  %v60 = vshrl.u32 %v59, 7
  %v61 = vsub.s32 0, %v60
  %v62 = vrot.slane %v57, %v61
  %v63 = vlaneseq
  %v64 = vshrl.u32 %v63, 7
  %v65 = vsub.s32 1, %v64
  %v66 = vrot.slane %v57, %v65
  %v69 = vmul.f32 %v55, %v62
  %v70 = vmul.f32 %v56, %v66
  %v71 = vadd.f32 %v69, %v70
  %72 = vadd.xlane.f32.xlu0 %v71
  %v73 = vpop.xlane.xlu0 %72
  %s74 = sld [smem:[#allocation2]]
  %v75 = vstv %s74
  %v76 = vadd.f32 %v73, %v75
  %vm77 = vcmask 7168
  %78 = vst.msk [vmem:[%s5] sm:$0xff] %vm77, %v76
  // Predicated region
  $region22: #{tpu_custom_call.1} parent=0 // pred_check
    _
  $region23: #{tpu_custom_call.1} parent=0 // pred_check_branch
    %80 = sbr.rel (0) target = $region25
  $region24: #{tpu_custom_call.1} parent=0 // pred_region
    _
  $region25: #{tpu_custom_call.1} parent=0 // pred_fallthru
    _
  // Predicated region
  $region26: #{tpu_custom_call.1} parent=0 // pred_check
    _
  $region27: #{tpu_custom_call.1} parent=0 // pred_check_branch
    %82 = sbr.rel (0) target = $region29
  $region28: #{tpu_custom_call.1} parent=0 // pred_region
    _
  $region29: #{tpu_custom_call.1} parent=0 // pred_fallthru
    _

</llo_original>
